<compile_context>
chip_gen: v5e
topology: v5e:2x2
jax: 0.10.0
libtpu: 0.0.40
codegen_flags: <defaults>
</compile_context>

<pallas_src>
import functools

import jax
import jax.numpy as jnp
from jax.experimental import pallas as pl
from jax.experimental.pallas import tpu as pltpu


def _round_up(x, m):
    return ((x + m - 1) // m) * m


def mlp_kernel(x_ref, w1_ref, b1_ref, w2_ref, b2_ref, o_ref):
    # x_ref:  [TILE_B, IN]      f32  (cast to bf16 here; VPU work hidden under MXU/DMA)
    # w1_ref: [IN, H_PAD]       bf16   b1_ref: [1, H_PAD]   f32
    # w2_ref: [H_PAD, OUT_PAD]  bf16   b2_ref: [1, OUT_PAD] f32
    # o_ref:  [TILE_B, OUT_PAD] bf16  (lane-dense; true 10 cols sliced in wrapper)
    x = x_ref[...].astype(jnp.bfloat16)
    h = jnp.dot(x, w1_ref[...], preferred_element_type=jnp.float32)
    h = jnp.maximum(h + b1_ref[...], 0.0)           # bias + ReLU in f32
    h = h.astype(jnp.bfloat16)                      # bf16 back into the MXU
    out = jnp.dot(h, w2_ref[...], preferred_element_type=jnp.float32) + b2_ref[...]
    o_ref[...] = out.astype(o_ref.dtype)


@functools.partial(jax.jit, static_argnames=("tile_b",))
def nn_forward(x_nchw, w1, b1, w2, b2, *, tile_b=1024):
    """Forward pass of NN. x_nchw: [B,1,28,28] f32. w1:[784,H] b1:[1,H] w2:[H,10] b2:[1,10]."""
    B = x_nchw.shape[0]
    in_dim, hidden = w1.shape
    out_dim = w2.shape[1]

    # flatten(start_dim=1); contiguous reshape, no copy, stays f32 (cast happens in-kernel).
    x_flat = x_nchw.reshape(B, in_dim)

    # Lane-dense padded feature dims (multiples of 128). in_dim is intentionally NOT padded.
    h_pad = _round_up(max(hidden, 128), 128)
    out_pad = _round_up(max(out_dim, 128), 128)

    # Batch tile: big for long grids, but keep >= 2 grid steps when B allows (v7x has 2 TCs),
    # and a multiple of 16 for bf16 sublane packing on tiny batches.
    tile_b = max(16, min(tile_b, _round_up(pl.cdiv(B, 2), 16)))
    grid = (pl.cdiv(B, tile_b),)

    # Weights / biases: zero-pad + bf16 cast (small arrays); biases stay f32 for the epilogue.
    w1_p = jnp.pad(w1, ((0, 0), (0, h_pad - hidden))).astype(jnp.bfloat16)
    b1_p = jnp.pad(b1.astype(jnp.float32), ((0, 0), (0, h_pad - hidden)))
    w2_p = jnp.pad(w2, ((0, h_pad - hidden), (0, out_pad - out_dim))).astype(jnp.bfloat16)
    b2_p = jnp.pad(b2.astype(jnp.float32), ((0, 0), (0, out_pad - out_dim)))

    # Resident (constant-index_map) weights are DMA'd once but double-buffered by default;
    # single-buffer them when large so big hidden dims still fit v7x's 64 MiB VMEM.
    weight_bytes = in_dim * h_pad * 2 + h_pad * out_pad * 2
    single_buf_weights = weight_bytes > (12 << 20)
    wkw = {"pipeline_mode": pl.Buffered(1)} if single_buf_weights else {}
    weight_bufs = 1 if single_buf_weights else 2

    vmem_est = (2 * tile_b * in_dim * 4              # x blocks, double-buffered, f32
                + 2 * tile_b * out_pad * 2           # out blocks, double-buffered, bf16
                + weight_bufs * weight_bytes         # resident weights
                + weight_bufs * (h_pad + out_pad) * 4 * 8)  # biases (sublane-padded)
    vmem_limit = int(max(vmem_est + (4 << 20), 32 << 20))

    out = pl.pallas_call(
        mlp_kernel,
        out_shape=jax.ShapeDtypeStruct((B, out_pad), jnp.bfloat16),
        grid=grid,
        in_specs=[
            # x: tiled over batch; double-buffered by the pipeline (DMA i+1 overlaps compute i).
            pl.BlockSpec((tile_b, in_dim), lambda i: (i, 0)),
            # Weights / biases: same block every grid step -> stay resident in VMEM.
            pl.BlockSpec((in_dim, h_pad), lambda i: (0, 0), **wkw),
            pl.BlockSpec((1, h_pad), lambda i: (0, 0), **wkw),
            pl.BlockSpec((h_pad, out_pad), lambda i: (0, 0), **wkw),
            pl.BlockSpec((1, out_pad), lambda i: (0, 0), **wkw),
        ],
        out_specs=pl.BlockSpec((tile_b, out_pad), lambda i: (i, 0)),
        compiler_params=pltpu.CompilerParams(
            dimension_semantics=("parallel",),
            vmem_limit_bytes=vmem_limit,
        ),
    )(x_flat, w1_p, b1_p, w2_p, b2_p)

    # Strip lane padding; return f32 like the torch module.
    return out[:, :out_dim].astype(jnp.float32)


def init_params(key, hidden_dim):
    """Deterministic init matching nn.Linear shapes (stored transposed: [in, out])."""
    k1, k2, k3, k4 = jax.random.split(key, 4)
    in_dim, out_dim = 28 * 28, 10
    lim1 = 1.0 / jnp.sqrt(jnp.float32(in_dim))
    lim2 = 1.0 / jnp.sqrt(jnp.float32(hidden_dim))
    w1 = jax.random.uniform(k1, (in_dim, hidden_dim), jnp.float32, -lim1, lim1)
    b1 = jax.random.uniform(k2, (1, hidden_dim), jnp.float32, -lim1, lim1)
    w2 = jax.random.uniform(k3, (hidden_dim, out_dim), jnp.float32, -lim2, lim2)
    b2 = jax.random.uniform(k4, (1, out_dim), jnp.float32, -lim2, lim2)
    return w1, b1, w2, b2


if __name__ == "__main__":
    key = jax.random.PRNGKey(0)
    k_x, k_p = jax.random.split(key)

    B, hidden_dim = 2, 32
    x = jax.random.normal(k_x, (B, 1, 28, 28), jnp.float32)
    w1, b1, w2, b2 = init_params(k_p, hidden_dim)

    out = nn_forward(x, w1, b1, w2, b2)
    out = jax.block_until_ready(out)
    assert out.shape == (B, 10)

    # Pure-JAX reference following the same bf16-input / f32-accumulate recipe.
    # NOTE: deviates from a pure-f32 torch reference by ~1e-2 relative (bf16 MXU inputs).
    x_flat = x.reshape(B, -1).astype(jnp.bfloat16)
    w1b, w2b = w1.astype(jnp.bfloat16), w2.astype(jnp.bfloat16)
    h_ref = jnp.maximum(jnp.dot(x_flat, w1b, preferred_element_type=jnp.float32) + b1, 0.0)
    ref = jnp.dot(h_ref.astype(jnp.bfloat16), w2b, preferred_element_type=jnp.float32) + b2
    assert jnp.allclose(out, ref, atol=2e-2, rtol=2e-2), (
        f"max abs diff {jnp.max(jnp.abs(out - ref))}")

    print("KERNEL_OK")
</pallas_src>

<mosaic_0001>
module attributes {stable_mosaic.version = 11 : i64} {
  func.func @mlp_kernel(%arg0: i32, %arg1: memref<16x784xf32, #tpu.memory_space<vmem>>, %arg2: memref<784x128xbf16, #tpu.memory_space<vmem>>, %arg3: memref<1x128xf32, #tpu.memory_space<vmem>>, %arg4: memref<128x128xbf16, #tpu.memory_space<vmem>>, %arg5: memref<1x128xf32, #tpu.memory_space<vmem>>, %arg6: memref<16x128xbf16, #tpu.memory_space<vmem>>) attributes {dimension_semantics = [#tpu.dimension_semantics<parallel>], iteration_bounds = array<i64: 1>, scalar_prefetch = 0 : i64, scratch_operands = 0 : i64, tpu.core_type = #tpu.core_type<tc>, window_params = [{transform_indices = @transform_0, window_bounds = array<i64: 16, 784>}, {pipeline_mode = #tpu.pipeline_mode<synchronous>, transform_indices = @transform_1, window_bounds = array<i64: 784, 128>}, {pipeline_mode = #tpu.pipeline_mode<synchronous>, transform_indices = @transform_2, window_bounds = array<i64: 1, 128>}, {pipeline_mode = #tpu.pipeline_mode<synchronous>, transform_indices = @transform_3, window_bounds = array<i64: 128, 128>}, {pipeline_mode = #tpu.pipeline_mode<synchronous>, transform_indices = @transform_4, window_bounds = array<i64: 1, 128>}, {transform_indices = @transform_5, window_bounds = array<i64: 16, 128>}]} {
    %c0 = arith.constant 0 : index
    %c0_0 = arith.constant 0 : index
    %0 = vector.load %arg1[%c0, %c0_0] : memref<16x784xf32, #tpu.memory_space<vmem>>, vector<16x784xf32>
    %1 = arith.truncf %0 : vector<16x784xf32> to vector<16x784xbf16>
    %c0_1 = arith.constant 0 : index
    %c0_2 = arith.constant 0 : index
    %2 = vector.load %arg2[%c0_1, %c0_2] : memref<784x128xbf16, #tpu.memory_space<vmem>>, vector<784x128xbf16>
    %cst = arith.constant dense<0.000000e+00> : vector<16x128xf32>
    %3 = tpu.matmul %1, %2, %cst {dimension_numbers = #tpu.dot_dimension_numbers<[1], [0], [0], [1], [0, 0, 1, 1], [], []>} : vector<16x784xbf16>, vector<784x128xbf16>, vector<16x128xf32> -> vector<16x128xf32>
    %c0_3 = arith.constant 0 : index
    %c0_4 = arith.constant 0 : index
    %4 = vector.load %arg3[%c0_3, %c0_4] : memref<1x128xf32, #tpu.memory_space<vmem>>, vector<1x128xf32>
    %5 = vector.broadcast %4 : vector<1x128xf32> to vector<16x128xf32>
    %6 = arith.addf %3, %5 : vector<16x128xf32>
    %cst_5 = arith.constant 0.000000e+00 : f32
    %7 = vector.broadcast %cst_5 : f32 to vector<16x128xf32>
    %8 = arith.maximumf %6, %7 : vector<16x128xf32>
    %9 = arith.truncf %8 : vector<16x128xf32> to vector<16x128xbf16>
    %c0_6 = arith.constant 0 : index
    %c0_7 = arith.constant 0 : index
    %10 = vector.load %arg4[%c0_6, %c0_7] : memref<128x128xbf16, #tpu.memory_space<vmem>>, vector<128x128xbf16>
    %cst_8 = arith.constant dense<0.000000e+00> : vector<16x128xf32>
    %11 = tpu.matmul %9, %10, %cst_8 {dimension_numbers = #tpu.dot_dimension_numbers<[1], [0], [0], [1], [0, 0, 1, 1], [], []>} : vector<16x128xbf16>, vector<128x128xbf16>, vector<16x128xf32> -> vector<16x128xf32>
    %c0_9 = arith.constant 0 : index
    %c0_10 = arith.constant 0 : index
    %12 = vector.load %arg5[%c0_9, %c0_10] : memref<1x128xf32, #tpu.memory_space<vmem>>, vector<1x128xf32>
    %13 = vector.broadcast %12 : vector<1x128xf32> to vector<16x128xf32>
    %14 = arith.addf %11, %13 : vector<16x128xf32>
    %15 = arith.truncf %14 : vector<16x128xf32> to vector<16x128xbf16>
    %c0_11 = arith.constant 0 : index
    %c0_12 = arith.constant 0 : index
    %16 = vector.load %arg6[%c0_11, %c0_12] : memref<16x128xbf16, #tpu.memory_space<vmem>>, vector<16x128xbf16>
    tpu.vector_store %arg6[%c0_11, %c0_12], %15 {strides = array<i32>} : memref<16x128xbf16, #tpu.memory_space<vmem>>, vector<16x128xbf16>,
    return
  }
  func.func @transform_0(%arg0: i32) -> (i32, i32) {
    %c0_i32 = arith.constant 0 : i32
    %c0_i32_0 = arith.constant 0 : i32
    return %arg0, %c0_i32 : i32, i32
  }
  func.func @transform_1(%arg0: i32) -> (i32, i32) {
    %c0_i32 = arith.constant 0 : i32
    %c0_i32_0 = arith.constant 0 : i32
    %c0_i32_1 = arith.constant 0 : i32
    return %c0_i32, %c0_i32_0 : i32, i32
  }
  func.func @transform_2(%arg0: i32) -> (i32, i32) {
    %c0_i32 = arith.constant 0 : i32
    %c0_i32_0 = arith.constant 0 : i32
    %c0_i32_1 = arith.constant 0 : i32
    return %c0_i32, %c0_i32_0 : i32, i32
  }
  func.func @transform_3(%arg0: i32) -> (i32, i32) {
    %c0_i32 = arith.constant 0 : i32
    %c0_i32_0 = arith.constant 0 : i32
    %c0_i32_1 = arith.constant 0 : i32
    return %c0_i32, %c0_i32_0 : i32, i32
  }
  func.func @transform_4(%arg0: i32) -> (i32, i32) {
    %c0_i32 = arith.constant 0 : i32
    %c0_i32_0 = arith.constant 0 : i32
    %c0_i32_1 = arith.constant 0 : i32
    return %c0_i32, %c0_i32_0 : i32, i32
  }
  func.func @transform_5(%arg0: i32) -> (i32, i32) {
    %c0_i32 = arith.constant 0 : i32
    %c0_i32_0 = arith.constant 0 : i32
    return %arg0, %c0_i32 : i32, i32
  }
}

</mosaic_0001>

<llo_original>
// kernel: nn_forward.1
$region0: #{nn_forward.1}
  #allocation0 [shape = 'u32[]', space=smem, size = 0x4, offset = 0x4, fixed_abs, tag = 'smem constant byte address 0x4 - core index']
  #allocation1 [shape = 'u32[72,128]{1,0:T(1,128)}', space=vmem, size = 0x9000, scoped, tag = 'internal scratch']
  %s0 = inlined_call_operand.vmem [shape: f32[2,784], index: 0, kind: input, shape index: {}]
  %s1 = inlined_call_operand.vmem [shape: bf16[784,128], index: 1, kind: input, shape index: {}]
  %s2 = inlined_call_operand.vmem [shape: f32[1,128], index: 2, kind: input, shape index: {}]
  %s3 = inlined_call_operand.vmem [shape: bf16[128,128], index: 3, kind: input, shape index: {}]
  %s4 = inlined_call_operand.vmem [shape: f32[1,128], index: 4, kind: input, shape index: {}]
  %s5 = inlined_call_operand.vmem [shape: bf16[2,128], index: 5, kind: output, shape index: {}]
  %s6 = sld [smem:[#allocation0]]
  $region60: #{nn_forward.1} parent=0
    _
  %s8 = ssub.s32 1, %s6
  %s9 = scalar_select 0, %s8, %s6
  $region1: #{nn_forward.1} parent=0
    #allocation2 [shape = 'u8[4096]{0}', space=vmem, size = 0x1000, scoped, tag = 'output window, operand 0, single buffered']
    // Predicated region
    $region2: #{nn_forward.1} parent=1 // pred_check
      _
    $region3: #{nn_forward.1} parent=1 // pred_check_branch
      %11 = sbr.rel (0) target = $region5
    $region4: #{nn_forward.1} parent=1 // pred_region
      _
    $region5: #{nn_forward.1} parent=1 // pred_fallthru
      _
    // Predicated region
    $region6: #{nn_forward.1} parent=1 // pred_check
      _
    $region7: #{nn_forward.1} parent=1 // pred_check_branch
      %13 = sbr.rel (0) target = $region9
    $region8: #{nn_forward.1} parent=1 // pred_region
      _
    $region9: #{nn_forward.1} parent=1 // pred_fallthru
      _
    // Predicated region
    $region10: #{nn_forward.1} parent=1 // pred_check
      _
    $region11: #{nn_forward.1} parent=1 // pred_check_branch
      %15 = sbr.rel (0) target = $region13
    $region12: #{nn_forward.1} parent=1 // pred_region
      _
    $region13: #{nn_forward.1} parent=1 // pred_fallthru
      _
    // Predicated region
    $region14: #{nn_forward.1} parent=1 // pred_check
      _
    $region15: #{nn_forward.1} parent=1 // pred_check_branch
      %17 = sbr.rel (0) target = $region17
    $region16: #{nn_forward.1} parent=1 // pred_region
      _
    $region17: #{nn_forward.1} parent=1 // pred_fallthru
      _
    // Predicated region
    $region18: #{nn_forward.1} parent=1 // pred_check
      _
    $region19: #{nn_forward.1} parent=1 // pred_check_branch
      %19 = sbr.rel (0) target = $region21
    $region20: #{nn_forward.1} parent=1 // pred_region
      _
    $region21: #{nn_forward.1} parent=1 // pred_fallthru
      _
    %v21 = vld [vmem:[%s0] sm:$0xff]
    %v22 = vld [vmem:[%s0 + $0x8] sm:$0x3f]
    %v23 = vld [vmem:[%s0 + $0xe] sm:$0xff]
    %v24 = vld [vmem:[%s0 + $0x16] sm:$0x3f]
    %v25 = vld [vmem:[%s0 + $0x1c] sm:$0xff]
    %v26 = vld [vmem:[%s0 + $0x24] sm:$0x3f]
    %v27 = vld [vmem:[%s0 + $0x2a] sm:$0xff]
    %v28 = vld [vmem:[%s0 + $0x32] sm:$0x3f]
    %v29 = vld [vmem:[%s0 + $0x38] sm:$0xff]
    %v30 = vld [vmem:[%s0 + $0x40] sm:$0x3f]
    %v31 = vld [vmem:[%s0 + $0x46] sm:$0xff]
    %v32 = vld [vmem:[%s0 + $0x4e] sm:$0x3f]
    %v33 = vld [vmem:[%s0 + $0x54] sm:$0xff]
    %v34 = vld [vmem:[%s0 + $0x5c] sm:$0x3f]
    %v35 = vld [vmem:[%s0 + $0x62] sm:$0xff]
    %v36 = vld [vmem:[%s0 + $0x6a] sm:$0x3f]
    %53 = vst [vmem:[#allocation1] ss:$4 sm:$0xff] %v21
    %s54 = scalar_lea.vmem [#allocation1], 1
    %55 = vst [vmem:[%s54] ss:$4 sm:$0xff] %v23
    %s56 = scalar_lea.vmem [#allocation1], 2
    %57 = vst [vmem:[%s56] ss:$4 sm:$0xff] %v25
    %s58 = scalar_lea.vmem [#allocation1], 3
    %59 = vst [vmem:[%s58] ss:$4 sm:$0xff] %v27
    %s60 = scalar_lea.vmem [#allocation1], 32
    %61 = vst [vmem:[%s60] ss:$4 sm:$0xff] %v22
    %s62 = scalar_lea.vmem [#allocation1], 33
    %63 = vst [vmem:[%s62] ss:$4 sm:$0xff] %v24
    %s64 = scalar_lea.vmem [#allocation1], 34
    %65 = vst [vmem:[%s64] ss:$4 sm:$0xff] %v26
    %s66 = scalar_lea.vmem [#allocation1], 35
    %67 = vst [vmem:[%s66] ss:$4 sm:$0xff] %v28
    %v68 = vld.sshfl [vmem:[#allocation1] sm:$0xff pattern:$0x73625140]
    %v69 = vld.sshfl [vmem:[#allocation1 + $0x8] sm:$0xff pattern:$0x73625140]
    %v70 = vld.sshfl [vmem:[#allocation1 + $0x10] sm:$0xff pattern:$0x73625140]
    %v71 = vld.sshfl [vmem:[#allocation1 + $0x18] sm:$0xff pattern:$0x73625140]
    %v72 = vld.sshfl [vmem:[#allocation1 + $0x20] sm:$0xff pattern:$0x73625140]
    %v73 = vld.sshfl [vmem:[#allocation1 + $0x28] sm:$0xff pattern:$0x73625140]
    %v74 = vld.sshfl [vmem:[#allocation1 + $0x30] sm:$0xff pattern:$0x73625140]
    %75 = vst [vmem:[#allocation1] ss:$4 sm:$0xff] %v29
    %76 = vst [vmem:[%s54] ss:$4 sm:$0xff] %v31
    %77 = vst [vmem:[%s56] ss:$4 sm:$0xff] %v33
    %78 = vst [vmem:[%s58] ss:$4 sm:$0xff] %v35
    %79 = vst [vmem:[%s60] ss:$4 sm:$0xff] %v30
    %80 = vst [vmem:[%s62] ss:$4 sm:$0xff] %v32
    %81 = vst [vmem:[%s64] ss:$4 sm:$0xff] %v34
    %82 = vst [vmem:[%s66] ss:$4 sm:$0xff] %v36
    %v83 = vld.sshfl [vmem:[#allocation1] sm:$0xff pattern:$0x73625140]
    %v84 = vld.sshfl [vmem:[#allocation1 + $0x8] sm:$0xff pattern:$0x73625140]
    %v85 = vld.sshfl [vmem:[#allocation1 + $0x10] sm:$0xff pattern:$0x73625140]
    %v86 = vld.sshfl [vmem:[#allocation1 + $0x18] sm:$0xff pattern:$0x73625140]
    %v87 = vld.sshfl [vmem:[#allocation1 + $0x20] sm:$0xff pattern:$0x73625140]
    %v88 = vld.sshfl [vmem:[#allocation1 + $0x28] sm:$0xff pattern:$0x73625140]
    %v89 = vld.sshfl [vmem:[#allocation1 + $0x30] sm:$0xff pattern:$0x73625140]
    %v104 = vpack.c.bf16 %v83, %v68
    %v105 = vpack.c.bf16 %v84, %v69
    %v106 = vpack.c.bf16 %v85, %v70
    %v107 = vpack.c.bf16 %v86, %v71
    %v108 = vpack.c.bf16 %v87, %v72
    %v109 = vpack.c.bf16 %v88, %v73
    %v110 = vpack.c.bf16 %v89, %v74
    %v111 = vld [vmem:[%s1] sm:$0xf]
    %v112 = vld [vmem:[%s1 + $0x4] sm:$0xf]
    %v113 = vld [vmem:[%s1 + $0x8] sm:$0xf]
    %v114 = vld [vmem:[%s1 + $0xc] sm:$0xf]
    %v115 = vld [vmem:[%s1 + $0x10] sm:$0xf]
    %v116 = vld [vmem:[%s1 + $0x14] sm:$0xf]
    %v117 = vld [vmem:[%s1 + $0x18] sm:$0xf]
    %v118 = vld [vmem:[%s1 + $0x1c] sm:$0xf]
    %v119 = vld [vmem:[%s1 + $0x20] sm:$0xf]
    %v120 = vld [vmem:[%s1 + $0x24] sm:$0xf]
    %v121 = vld [vmem:[%s1 + $0x28] sm:$0xf]
    %v122 = vld [vmem:[%s1 + $0x2c] sm:$0xf]
    %v123 = vld [vmem:[%s1 + $0x30] sm:$0xf]
    %v124 = vld [vmem:[%s1 + $0x34] sm:$0xf]
    %v125 = vld [vmem:[%s1 + $0x38] sm:$0xf]
    %v126 = vld [vmem:[%s1 + $0x3c] sm:$0xf]
    %v127 = vld [vmem:[%s1 + $0x40] sm:$0xf]
    %v128 = vld [vmem:[%s1 + $0x44] sm:$0xf]
    %v129 = vld [vmem:[%s1 + $0x48] sm:$0xf]
    %v130 = vld [vmem:[%s1 + $0x4c] sm:$0xf]
    %v131 = vld [vmem:[%s1 + $0x50] sm:$0xf]
    %v132 = vld [vmem:[%s1 + $0x54] sm:$0xf]
    %v133 = vld [vmem:[%s1 + $0x58] sm:$0xf]
    %v134 = vld [vmem:[%s1 + $0x5c] sm:$0xf]
    %v135 = vld [vmem:[%s1 + $0x60] sm:$0xf]
    %v136 = vld [vmem:[%s1 + $0x64] sm:$0xf]
    %v137 = vld [vmem:[%s1 + $0x68] sm:$0xf]
    %v138 = vld [vmem:[%s1 + $0x6c] sm:$0xf]
    %v139 = vld [vmem:[%s1 + $0x70] sm:$0xf]
    %v140 = vld [vmem:[%s1 + $0x74] sm:$0xf]
    %v141 = vld [vmem:[%s1 + $0x78] sm:$0xf]
    %v142 = vld [vmem:[%s1 + $0x7c] sm:$0xf]
    %v143 = vld [vmem:[%s1 + $0x80] sm:$0xf]
    %v144 = vld [vmem:[%s1 + $0x84] sm:$0xf]
    %v145 = vld [vmem:[%s1 + $0x88] sm:$0xf]
    %v146 = vld [vmem:[%s1 + $0x8c] sm:$0xf]
    %v147 = vld [vmem:[%s1 + $0x90] sm:$0xf]
    %v148 = vld [vmem:[%s1 + $0x94] sm:$0xf]
    %v149 = vld [vmem:[%s1 + $0x98] sm:$0xf]
    %v150 = vld [vmem:[%s1 + $0x9c] sm:$0xf]
    %v151 = vld [vmem:[%s1 + $0xa0] sm:$0xf]
    %v152 = vld [vmem:[%s1 + $0xa4] sm:$0xf]
    %v153 = vld [vmem:[%s1 + $0xa8] sm:$0xf]
    %v154 = vld [vmem:[%s1 + $0xac] sm:$0xf]
    %v155 = vld [vmem:[%s1 + $0xb0] sm:$0xf]
    %v156 = vld [vmem:[%s1 + $0xb4] sm:$0xf]
    %v157 = vld [vmem:[%s1 + $0xb8] sm:$0xf]
    %v158 = vld [vmem:[%s1 + $0xbc] sm:$0xf]
    %v159 = vld [vmem:[%s1 + $0xc0] sm:$0xf]
    %v160 = vld [vmem:[%s1 + $0xc4] sm:$0xf]
    %v161 = vld [vmem:[%s1 + $0xc8] sm:$0xf]
    %v162 = vld [vmem:[%s1 + $0xcc] sm:$0xf]
    %v163 = vld [vmem:[%s1 + $0xd0] sm:$0xf]
    %v164 = vld [vmem:[%s1 + $0xd4] sm:$0xf]
    %v165 = vld [vmem:[%s1 + $0xd8] sm:$0xf]
    %v166 = vld [vmem:[%s1 + $0xdc] sm:$0xf]
    %v167 = vld [vmem:[%s1 + $0xe0] sm:$0xf]
    %v168 = vld [vmem:[%s1 + $0xe4] sm:$0xf]
    %v169 = vld [vmem:[%s1 + $0xe8] sm:$0xf]
    %v170 = vld [vmem:[%s1 + $0xec] sm:$0xf]
    %v171 = vld [vmem:[%s1 + $0xf0] sm:$0xf]
    %v172 = vld [vmem:[%s1 + $0xf4] sm:$0xf]
    %v173 = vld [vmem:[%s1 + $0xf8] sm:$0xf]
    %v174 = vld [vmem:[%s1 + $0xfc] sm:$0xf]
    %v175 = vld [vmem:[%s1 + $0x100] sm:$0xf]
    %v176 = vld [vmem:[%s1 + $0x104] sm:$0xf]
    %v177 = vld [vmem:[%s1 + $0x108] sm:$0xf]
    %v178 = vld [vmem:[%s1 + $0x10c] sm:$0xf]
    %v179 = vld [vmem:[%s1 + $0x110] sm:$0xf]
    %v180 = vld [vmem:[%s1 + $0x114] sm:$0xf]
    %v181 = vld [vmem:[%s1 + $0x118] sm:$0xf]
    %v182 = vld [vmem:[%s1 + $0x11c] sm:$0xf]
    %v183 = vld [vmem:[%s1 + $0x120] sm:$0xf]
    %v184 = vld [vmem:[%s1 + $0x124] sm:$0xf]
    %v185 = vld [vmem:[%s1 + $0x128] sm:$0xf]
    %v186 = vld [vmem:[%s1 + $0x12c] sm:$0xf]
    %v187 = vld [vmem:[%s1 + $0x130] sm:$0xf]
    %v188 = vld [vmem:[%s1 + $0x134] sm:$0xf]
    %v189 = vld [vmem:[%s1 + $0x138] sm:$0xf]
    %v190 = vld [vmem:[%s1 + $0x13c] sm:$0xf]
    %v191 = vld [vmem:[%s1 + $0x140] sm:$0xf]
    %v192 = vld [vmem:[%s1 + $0x144] sm:$0xf]
    %v193 = vld [vmem:[%s1 + $0x148] sm:$0xf]
    %v194 = vld [vmem:[%s1 + $0x14c] sm:$0xf]
    %v195 = vld [vmem:[%s1 + $0x150] sm:$0xf]
    %v196 = vld [vmem:[%s1 + $0x154] sm:$0xf]
    %v197 = vld [vmem:[%s1 + $0x158] sm:$0xf]
    %v198 = vld [vmem:[%s1 + $0x15c] sm:$0xf]
    %v199 = vld [vmem:[%s1 + $0x160] sm:$0xf]
    %v200 = vld [vmem:[%s1 + $0x164] sm:$0xf]
    %v201 = vld [vmem:[%s1 + $0x168] sm:$0xf]
    %v202 = vld [vmem:[%s1 + $0x16c] sm:$0xf]
    %v203 = vld [vmem:[%s1 + $0x170] sm:$0xf]
    %v204 = vld [vmem:[%s1 + $0x174] sm:$0xf]
    %v205 = vld [vmem:[%s1 + $0x178] sm:$0xf]
    %v206 = vld [vmem:[%s1 + $0x17c] sm:$0xf]
    %v207 = vld [vmem:[%s1 + $0x180] sm:$0xf]
    %v208 = vld [vmem:[%s1 + $0x184] sm:$0xf]
    %v209 = vld [vmem:[%s2] sm:$0x1]
    %v211 = vperm.slane %v209, 0
    %v311 = vunpack.c.l.b16 %v111
    %v312 = vunpack.c.l.b16 %v112
    %v313 = vunpack.c.l.b16 %v113
    %v314 = vunpack.c.l.b16 %v114
    %v315 = vunpack.c.l.b16 %v115
    %v316 = vunpack.c.l.b16 %v116
    %v317 = vunpack.c.l.b16 %v117
    %v318 = vunpack.c.l.b16 %v118
    %v319 = vunpack.c.l.b16 %v119
    %v320 = vunpack.c.l.b16 %v120
    %v321 = vunpack.c.l.b16 %v121
    %v322 = vunpack.c.l.b16 %v122
    %v323 = vunpack.c.l.b16 %v123
    %v324 = vunpack.c.l.b16 %v124
    %v325 = vunpack.c.l.b16 %v125
    %v326 = vunpack.c.l.b16 %v126
    %v327 = vunpack.c.l.b16 %v127
    %v328 = vunpack.c.l.b16 %v128
    %v329 = vunpack.c.l.b16 %v129
    %v330 = vunpack.c.l.b16 %v130
    %v331 = vunpack.c.l.b16 %v131
    %v332 = vunpack.c.l.b16 %v132
    %v333 = vunpack.c.l.b16 %v133
    %v334 = vunpack.c.l.b16 %v134
    %v335 = vunpack.c.l.b16 %v135
    %v336 = vunpack.c.l.b16 %v136
    %v337 = vunpack.c.l.b16 %v137
    %v338 = vunpack.c.l.b16 %v138
    %v339 = vunpack.c.l.b16 %v139
    %v340 = vunpack.c.l.b16 %v140
    %v341 = vunpack.c.l.b16 %v141
    %v342 = vunpack.c.l.b16 %v142
    %v343 = vunpack.c.l.b16 %v143
    %v344 = vunpack.c.l.b16 %v144
    %v345 = vunpack.c.l.b16 %v145
    %v346 = vunpack.c.l.b16 %v146
    %v347 = vunpack.c.l.b16 %v147
    %v348 = vunpack.c.l.b16 %v148
    %v349 = vunpack.c.l.b16 %v149
    %v350 = vunpack.c.l.b16 %v150
    %v351 = vunpack.c.l.b16 %v151
    %v352 = vunpack.c.l.b16 %v152
    %v353 = vunpack.c.l.b16 %v153
    %v354 = vunpack.c.l.b16 %v154
    %v355 = vunpack.c.l.b16 %v155
    %v356 = vunpack.c.l.b16 %v156
    %v357 = vunpack.c.l.b16 %v157
    %v358 = vunpack.c.l.b16 %v158
    %v359 = vunpack.c.l.b16 %v159
    %v360 = vunpack.c.l.b16 %v160
    %v361 = vunpack.c.l.b16 %v161
    %v362 = vunpack.c.l.b16 %v162
    %v363 = vunpack.c.l.b16 %v163
    %v364 = vunpack.c.l.b16 %v164
    %v365 = vunpack.c.l.b16 %v165
    %v366 = vunpack.c.l.b16 %v166
    %v367 = vunpack.c.l.b16 %v167
    %v368 = vunpack.c.l.b16 %v168
    %v369 = vunpack.c.l.b16 %v169
    %v370 = vunpack.c.l.b16 %v170
    %v371 = vunpack.c.l.b16 %v171
    %v372 = vunpack.c.l.b16 %v172
    %v373 = vunpack.c.l.b16 %v173
    %v374 = vunpack.c.l.b16 %v174
    %v375 = vunpack.c.l.b16 %v175
    %v376 = vunpack.c.l.b16 %v176
    %v377 = vunpack.c.l.b16 %v177
    %v378 = vunpack.c.l.b16 %v178
    %v379 = vunpack.c.l.b16 %v179
    %v380 = vunpack.c.l.b16 %v180
    %v381 = vunpack.c.l.b16 %v181
    %v382 = vunpack.c.l.b16 %v182
    %v383 = vunpack.c.l.b16 %v183
    %v384 = vunpack.c.l.b16 %v184
    %v385 = vunpack.c.l.b16 %v185
    %v386 = vunpack.c.l.b16 %v186
    %v387 = vunpack.c.l.b16 %v187
    %v388 = vunpack.c.l.b16 %v188
    %v389 = vunpack.c.l.b16 %v189
    %v390 = vunpack.c.l.b16 %v190
    %v391 = vunpack.c.l.b16 %v191
    %v392 = vunpack.c.l.b16 %v192
    %v393 = vunpack.c.l.b16 %v193
    %v394 = vunpack.c.l.b16 %v194
    %v395 = vunpack.c.l.b16 %v195
    %v396 = vunpack.c.l.b16 %v196
    %v397 = vunpack.c.l.b16 %v197
    %v398 = vunpack.c.l.b16 %v198
    %v399 = vunpack.c.l.b16 %v199
    %v400 = vunpack.c.l.b16 %v200
    %v401 = vunpack.c.l.b16 %v201
    %v402 = vunpack.c.l.b16 %v202
    %v403 = vunpack.c.l.b16 %v203
    %v404 = vunpack.c.l.b16 %v204
    %v405 = vunpack.c.l.b16 %v205
    %v406 = vunpack.c.l.b16 %v206
    %v407 = vunpack.c.l.b16 %v207
    %v408 = vunpack.c.l.b16 %v208
    %v409 = vpack.c.b16 %v312, %v311
    %v410 = vpack.c.b16 %v314, %v313
    %v411 = vpack.c.b16 %v316, %v315
    %v412 = vpack.c.b16 %v318, %v317
    %v413 = vpack.c.b16 %v320, %v319
    %v414 = vpack.c.b16 %v322, %v321
    %v415 = vpack.c.b16 %v324, %v323
    %v416 = vpack.c.b16 %v326, %v325
    %v417 = vpack.c.b16 %v328, %v327
    %v418 = vpack.c.b16 %v330, %v329
    %v419 = vpack.c.b16 %v332, %v331
    %v420 = vpack.c.b16 %v334, %v333
    %v421 = vpack.c.b16 %v336, %v335
    %v422 = vpack.c.b16 %v338, %v337
    %v423 = vpack.c.b16 %v340, %v339
    %v424 = vpack.c.b16 %v342, %v341
    %v425 = vpack.c.b16 %v344, %v343
    %v426 = vpack.c.b16 %v346, %v345
    %v427 = vpack.c.b16 %v348, %v347
    %v428 = vpack.c.b16 %v350, %v349
    %v429 = vpack.c.b16 %v352, %v351
    %v430 = vpack.c.b16 %v354, %v353
    %v431 = vpack.c.b16 %v356, %v355
    %v432 = vpack.c.b16 %v358, %v357
    %v433 = vpack.c.b16 %v360, %v359
    %v434 = vpack.c.b16 %v362, %v361
    %v435 = vpack.c.b16 %v364, %v363
    %v436 = vpack.c.b16 %v366, %v365
    %v437 = vpack.c.b16 %v368, %v367
    %v438 = vpack.c.b16 %v370, %v369
    %v439 = vpack.c.b16 %v372, %v371
    %v440 = vpack.c.b16 %v374, %v373
    %v441 = vpack.c.b16 %v376, %v375
    %v442 = vpack.c.b16 %v378, %v377
    %v443 = vpack.c.b16 %v380, %v379
    %v444 = vpack.c.b16 %v382, %v381
    %v445 = vpack.c.b16 %v384, %v383
    %v446 = vpack.c.b16 %v386, %v385
    %v447 = vpack.c.b16 %v388, %v387
    %v448 = vpack.c.b16 %v390, %v389
    %v449 = vpack.c.b16 %v392, %v391
    %v450 = vpack.c.b16 %v394, %v393
    %v451 = vpack.c.b16 %v396, %v395
    %v452 = vpack.c.b16 %v398, %v397
    %v453 = vpack.c.b16 %v400, %v399
    %v454 = vpack.c.b16 %v402, %v401
    %v455 = vpack.c.b16 %v404, %v403
    %v456 = vpack.c.b16 %v406, %v405
    %v457 = vpack.c.b16 %v408, %v407
    %vm507 = vcmask 130048
    %v509 = vsel %vm507, %v110, 0
    %511 = vmatpush.bf16.msra.mxu0 %v416
    %512 = vmatpush.bf16.msra.mxu0 %v415
    %513 = vmatpush.bf16.msra.mxu0 %v414
    %514 = vmatpush.bf16.msra.mxu0 %v413
    %515 = vmatpush.bf16.msra.mxu0 %v412
    %516 = vmatpush.bf16.msra.mxu0 %v411
    %517 = vmatpush.bf16.msra.mxu0 %v410
    %518 = vmatpush.bf16.msra.mxu0 %v409
    %519 = vmatmul.bf16.gmra.mxu0 %v104
    %v520 = vpop.f32.mrf.mxu0
    %v521 = vadd.f32 %v211, %v520
    %v522 = vpop.f32.mrf.mxu0
    %v523 = vadd.f32 %v211, %v522
    %524 = vdwg.mxu0
    %525 = vmatpush.bf16.msra.mxu0 %v424
    %526 = vmatpush.bf16.msra.mxu0 %v423
    %527 = vmatpush.bf16.msra.mxu0 %v422
    %528 = vmatpush.bf16.msra.mxu0 %v421
    %529 = vmatpush.bf16.msra.mxu0 %v420
    %530 = vmatpush.bf16.msra.mxu0 %v419
    %531 = vmatpush.bf16.msra.mxu0 %v418
    %532 = vmatpush.bf16.msra.mxu0 %v417
    %533 = vmatmul.bf16.gmra.mxu0 %v105
    %v534 = vpop.f32.mrf.mxu0
    %v535 = vadd.f32 %v521, %v534
    %v536 = vpop.f32.mrf.mxu0
    %v537 = vadd.f32 %v523, %v536
    %538 = vdwg.mxu0
    %539 = vmatpush.bf16.msra.mxu0 %v432
    %540 = vmatpush.bf16.msra.mxu0 %v431
    %541 = vmatpush.bf16.msra.mxu0 %v430
    %542 = vmatpush.bf16.msra.mxu0 %v429
    %543 = vmatpush.bf16.msra.mxu0 %v428
    %544 = vmatpush.bf16.msra.mxu0 %v427
    %545 = vmatpush.bf16.msra.mxu0 %v426
    %546 = vmatpush.bf16.msra.mxu0 %v425
    %547 = vmatmul.bf16.gmra.mxu0 %v106
    %v548 = vpop.f32.mrf.mxu0
    %v549 = vadd.f32 %v535, %v548
    %v550 = vpop.f32.mrf.mxu0
    %v551 = vadd.f32 %v537, %v550
    %552 = vdwg.mxu0
    %553 = vmatpush.bf16.msra.mxu0 %v440
    %554 = vmatpush.bf16.msra.mxu0 %v439
    %555 = vmatpush.bf16.msra.mxu0 %v438
    %556 = vmatpush.bf16.msra.mxu0 %v437
    %557 = vmatpush.bf16.msra.mxu0 %v436
    %558 = vmatpush.bf16.msra.mxu0 %v435
    %559 = vmatpush.bf16.msra.mxu0 %v434
    %560 = vmatpush.bf16.msra.mxu0 %v433
    %561 = vmatmul.bf16.gmra.mxu0 %v107
    %v562 = vpop.f32.mrf.mxu0
    %v563 = vadd.f32 %v549, %v562
    %v564 = vpop.f32.mrf.mxu0
    %v565 = vadd.f32 %v551, %v564
    %566 = vdwg.mxu0
    %567 = vmatpush.bf16.msra.mxu0 %v448
    %568 = vmatpush.bf16.msra.mxu0 %v447
    %569 = vmatpush.bf16.msra.mxu0 %v446
    %570 = vmatpush.bf16.msra.mxu0 %v445
    %571 = vmatpush.bf16.msra.mxu0 %v444
    %572 = vmatpush.bf16.msra.mxu0 %v443
    %573 = vmatpush.bf16.msra.mxu0 %v442
    %574 = vmatpush.bf16.msra.mxu0 %v441
    %575 = vmatmul.bf16.gmra.mxu0 %v108
    %v576 = vpop.f32.mrf.mxu0
    %v577 = vadd.f32 %v563, %v576
    %v578 = vpop.f32.mrf.mxu0
    %v579 = vadd.f32 %v565, %v578
    %580 = vdwg.mxu0
    %581 = vmatpush.bf16.msra.mxu0 %v456
    %582 = vmatpush.bf16.msra.mxu0 %v455
    %583 = vmatpush.bf16.msra.mxu0 %v454
    %584 = vmatpush.bf16.msra.mxu0 %v453
    %585 = vmatpush.bf16.msra.mxu0 %v452
    %586 = vmatpush.bf16.msra.mxu0 %v451
    %587 = vmatpush.bf16.msra.mxu0 %v450
    %588 = vmatpush.bf16.msra.mxu0 %v449
    %589 = vmatmul.bf16.gmra.mxu0 %v109
    %v590 = vpop.f32.mrf.mxu0
    %v591 = vadd.f32 %v577, %v590
    %v592 = vpop.f32.mrf.mxu0
    %v593 = vadd.f32 %v579, %v592
    %594 = vdwg.mxu0
    %595 = vmatpush.bf16.msra.mxu0 0
    %596 = vmatpush.bf16.msra.mxu0 0
    %597 = vmatpush.bf16.msra.mxu0 0
    %598 = vmatpush.bf16.msra.mxu0 0
    %599 = vmatpush.bf16.msra.mxu0 0
    %600 = vmatpush.bf16.msra.mxu0 0
    %601 = vmatpush.bf16.msra.mxu0 0
    %602 = vmatpush.bf16.msra.mxu0 %v457
    %603 = vmatmul.bf16.gmra.mxu0 %v509
    %v604 = vpop.f32.mrf.mxu0
    %v605 = vadd.f32 %v591, %v604
    %v606 = vpop.f32.mrf.mxu0
    %v607 = vadd.f32 %v593, %v606
    %608 = vdwg.mxu0
    %v609 = vmax.f32 %v605, 0.0
    %v610 = vmax.f32 %v607, 0.0
    %v611 = vpack.c.bf16 %v610, %v609
    %v612 = vld [vmem:[%s3] sm:$0xf]
    %v613 = vld [vmem:[%s3 + $0x4] sm:$0xf]
    %v614 = vld [vmem:[%s3 + $0x8] sm:$0xf]
    %v615 = vld [vmem:[%s3 + $0xc] sm:$0xf]
    %v616 = vld [vmem:[%s3 + $0x10] sm:$0xf]
    %v617 = vld [vmem:[%s3 + $0x14] sm:$0xf]
    %v618 = vld [vmem:[%s3 + $0x18] sm:$0xf]
    %v619 = vld [vmem:[%s3 + $0x1c] sm:$0xf]
    %v620 = vld [vmem:[%s3 + $0x20] sm:$0xf]
    %v621 = vld [vmem:[%s3 + $0x24] sm:$0xf]
    %v622 = vld [vmem:[%s3 + $0x28] sm:$0xf]
    %v623 = vld [vmem:[%s3 + $0x2c] sm:$0xf]
    %v624 = vld [vmem:[%s3 + $0x30] sm:$0xf]
    %v625 = vld [vmem:[%s3 + $0x34] sm:$0xf]
    %v626 = vld [vmem:[%s3 + $0x38] sm:$0xf]
    %v627 = vld [vmem:[%s3 + $0x3c] sm:$0xf]
    %v628 = vld [vmem:[%s4] sm:$0x1]
    %v630 = vperm.slane %v628, 0
    %v648 = vunpack.c.l.b16 %v612
    %v649 = vunpack.c.l.b16 %v613
    %v650 = vunpack.c.l.b16 %v614
    %v651 = vunpack.c.l.b16 %v615
    %v652 = vunpack.c.l.b16 %v616
    %v653 = vunpack.c.l.b16 %v617
    %v654 = vunpack.c.l.b16 %v618
    %v655 = vunpack.c.l.b16 %v619
    %v656 = vunpack.c.l.b16 %v620
    %v657 = vunpack.c.l.b16 %v621
    %v658 = vunpack.c.l.b16 %v622
    %v659 = vunpack.c.l.b16 %v623
    %v660 = vunpack.c.l.b16 %v624
    %v661 = vunpack.c.l.b16 %v625
    %v662 = vunpack.c.l.b16 %v626
    %v663 = vunpack.c.l.b16 %v627
    %v664 = vpack.c.b16 %v649, %v648
    %v665 = vpack.c.b16 %v651, %v650
    %v666 = vpack.c.b16 %v653, %v652
    %v667 = vpack.c.b16 %v655, %v654
    %v668 = vpack.c.b16 %v657, %v656
    %v669 = vpack.c.b16 %v659, %v658
    %v670 = vpack.c.b16 %v661, %v660
    %v671 = vpack.c.b16 %v663, %v662
    %680 = vmatpush.bf16.msra.mxu0 %v671
    %681 = vmatpush.bf16.msra.mxu0 %v670
    %682 = vmatpush.bf16.msra.mxu0 %v669
    %683 = vmatpush.bf16.msra.mxu0 %v668
    %684 = vmatpush.bf16.msra.mxu0 %v667
    %685 = vmatpush.bf16.msra.mxu0 %v666
    %686 = vmatpush.bf16.msra.mxu0 %v665
    %687 = vmatpush.bf16.msra.mxu0 %v664
    %688 = vmatmul.bf16.gmra.mxu0 %v611
    %v689 = vpop.f32.mrf.mxu0
    %v690 = vadd.f32 %v630, %v689
    %v691 = vpop.f32.mrf.mxu0
    %v692 = vadd.f32 %v630, %v691
    %693 = vdwg.mxu0
    %v694 = vpack.c.bf16 %v690, %v690
    %v695 = vpack.c.bf16 %v692, %v692
    %v698 = vrot.slane %v694, 3
    %v699 = vrot.slane %v695, 3
    %vm700 = vcmask 1040384
    %v703 = vsel %vm700, %v694, %v698
    %vm704 = vcmask 1041409
    %v705 = vsel %vm704, %v694, %v698
    %v707 = vrot.slane %v705, 1
    %vm708 = vcmask 1042434
    %v709 = vsel %vm708, %v694, %v698
    %v711 = vrot.slane %v709, 2
    %vm712 = vcmask 1043459
    %v713 = vsel %vm712, %v694, %v698
    %v715 = vrot.slane %v713, 3
    %v718 = vsel %vm700, %v695, %v699
    %v719 = vsel %vm704, %v695, %v699
    %v721 = vrot.slane %v719, 1
    %v722 = vsel %vm708, %v695, %v699
    %v724 = vrot.slane %v722, 2
    %v725 = vsel %vm712, %v695, %v699
    %v727 = vrot.slane %v725, 3
    %736 = vst [vmem:[#allocation2] sm:$0x1] %v703
    %737 = vst [vmem:[#allocation2 + $0x1] sm:$0x1] %v707
    %738 = vst [vmem:[#allocation2 + $0x2] sm:$0x1] %v711
    %739 = vst [vmem:[#allocation2 + $0x3] sm:$0x1] %v715
    %740 = vst [vmem:[#allocation2 + $0x4] sm:$0x1] %v718
    %741 = vst [vmem:[#allocation2 + $0x5] sm:$0x1] %v721
    %742 = vst [vmem:[#allocation2 + $0x6] sm:$0x1] %v724
    %743 = vst [vmem:[#allocation2 + $0x7] sm:$0x1] %v727
    // Predicated region
    $region22: #{nn_forward.1} parent=1 // pred_check
      _
    $region23: #{nn_forward.1} parent=1 // pred_check_branch
      %745 = sbr.rel (0) target = $region25
    $region24: #{nn_forward.1} parent=1 // pred_region
      // Predicated region
      $region26: #{nn_forward.1} parent=24 // pred_check
        _
      $region27: #{nn_forward.1} parent=24 // pred_check_branch
        %747 = sbr.rel (0) target = $region29
      $region28: #{nn_forward.1} parent=24 // pred_region
        // Predicated region
        $region30: #{nn_forward.1} parent=28 // pred_check
          _
        $region31: #{nn_forward.1} parent=28 // pred_check_branch
          %749 = sbr.rel target = $region33
        $region32: #{nn_forward.1} parent=28 // pred_region
          // Predicated region
          $region45: #{nn_forward.1} parent=32 // pred_check
            _
          $region46: #{nn_forward.1} parent=32 // pred_check_branch
            %765 = sbr.rel (0) target = $region48
          $region47: #{nn_forward.1} parent=32 // pred_region
            %s767 = ssub.s32 2, 1
            loop: start=0, step=1, limit=1
            $region49: #{nn_forward.1} parent=47 // loop_pre_header
              _
            $region50: #{nn_forward.1} parent=47 // loop_header
              %s769 = sphi 0, %s773
              %p770 = scmp.ge.s32.totalorder %s769, 1
              %s774 = sphi [#allocation2], [#allocation2]
              %s775 = sphi %s5, %s5
            $region51: #{nn_forward.1} parent=47 // loop_header_branch
              %772 = sbr.rel (%p770) target = $region55
            $region52: #{nn_forward.1} parent=47 // loop_body
              %v776 = vld [vmem:[%s774] sm:%s767]
              %777 = vst [vmem:[%s775] sm:%s767] %v776
            $region53: #{nn_forward.1} parent=47 // loop_footer
              %s773 = sadd.s32 1, %s769
            $region54: #{nn_forward.1} parent=47 // loop_footer_branch
              %768 = sbr.rel target = $region50
            $region55: #{nn_forward.1} parent=47 // loop_exit
              _
          $region48: #{nn_forward.1} parent=32 // pred_fallthru
            _
        $region33: #{nn_forward.1} parent=28 // pred_fallthru
          _
        // Predicated region
        $region34: #{nn_forward.1} parent=28 // pred_check
          _
        $region35: #{nn_forward.1} parent=28 // pred_check_branch
          %751 = sbr.rel (0) target = $region37
        $region36: #{nn_forward.1} parent=28 // pred_region
          %s753 = ssub.s32 2, 1
          loop: start=0, step=1, limit=1
          $region38: #{nn_forward.1} parent=36 // loop_pre_header
            _
          $region39: #{nn_forward.1} parent=36 // loop_header
            %s755 = sphi 0, %s759
            %p756 = scmp.ge.s32.totalorder %s755, 1
            %s760 = sphi [#allocation2], [#allocation2]
            %s761 = sphi %s5, %s5
          $region40: #{nn_forward.1} parent=36 // loop_header_branch
            %758 = sbr.rel (%p756) target = $region44
          $region41: #{nn_forward.1} parent=36 // loop_body
            %v762 = vld [vmem:[%s760] sm:%s753]
            %763 = vst [vmem:[%s761] sm:%s753] %v762
          $region42: #{nn_forward.1} parent=36 // loop_footer
            %s759 = sadd.s32 1, %s755
          $region43: #{nn_forward.1} parent=36 // loop_footer_branch
            %754 = sbr.rel target = $region39
          $region44: #{nn_forward.1} parent=36 // loop_exit
            _
        $region37: #{nn_forward.1} parent=28 // pred_fallthru
          _
      $region29: #{nn_forward.1} parent=24 // pred_fallthru
        _
      %778 = vnop
    $region25: #{nn_forward.1} parent=1 // pred_fallthru
      _
    // Predicated region
    $region56: #{nn_forward.1} parent=1 // pred_check
      _
    $region57: #{nn_forward.1} parent=1 // pred_check_branch
      %780 = sbr.rel (0) target = $region59
    $region58: #{nn_forward.1} parent=1 // pred_region
      _
    $region59: #{nn_forward.1} parent=1 // pred_fallthru
      _

</llo_original>
